<compile_context>
chip_gen: v7x
topology: tpu7x:2x2x1
jax: 0.10.0
libtpu: 0.0.40
codegen_flags: <defaults>
</compile_context>

<pallas_src>
import functools

import jax
import jax.numpy as jnp
from jax.experimental import pallas as pl
from jax.experimental.pallas import tpu as pltpu


_LEAKY_SLOPE = 0.1


def _leaky_relu(x, slope=_LEAKY_SLOPE):
    return jnp.where(x > 0, x, slope * x)


def _round_up(n, m):
    return (n + m - 1) // m * m


def mlp_score_kernel(x_ref, w1_ref, b1_ref, w2_ref, b2_ref, w3_ref, b3_ref, o_ref):
    # x tile arrives f32; cast to bf16 in-kernel (hidden under DMA). All
    # accumulation, bias adds and LeakyReLU happen in f32.
    x = x_ref[...].astype(jnp.bfloat16)

    h = jnp.dot(x, w1_ref[...], preferred_element_type=jnp.float32) + b1_ref[...]
    h = _leaky_relu(h)
    # dropout (eval mode) -> identity
    # TODO(synk): training-mode dropout (pltpu.prng_random_bits mask) not implemented.

    h = jnp.dot(h.astype(w2_ref.dtype), w2_ref[...],
                preferred_element_type=jnp.float32) + b2_ref[...]
    h = _leaky_relu(h)
    # dropout (eval mode) -> identity

    y = jnp.dot(h.astype(w3_ref.dtype), w3_ref[...],
                preferred_element_type=jnp.float32) + b3_ref[...]
    o_ref[...] = y.astype(o_ref.dtype)


@functools.partial(jax.jit, static_argnames=("block_m",))
def mlp_score_layer(x, w1, b1, w2, b2, w3, b3, *, block_m=1024):
    """Fused fc1->LeakyReLU->fc2->LeakyReLU->fc3 (eval-mode dropout = identity).

    x: (M, input_dim) f32. Weights stored as (in, out) (f32 or bf16),
    biases as (1, out) f32. Returns (M, output_dim) f32.
    """
    m, d_in = x.shape
    h1 = w1.shape[1]
    h2 = w2.shape[1]
    d_out = w3.shape[1]

    # bf16 matmul weights; no-op if already bf16 (pre-cast by the caller).
    bf = jnp.bfloat16
    w1_c = w1.astype(bf)
    w2_c = w2.astype(bf)
    w3_c = w3.astype(bf)

    # Row tile: big enough to amortize the ~0.35us/step pipeline overhead,
    # capped at block_m; rounded to a multiple of 16 (bf16 sublane packing).
    bm = max(16, min(block_m, _round_up(m, 16)))
    grid = (pl.cdiv(m, bm),)

    out = pl.pallas_call(
        mlp_score_kernel,
        out_shape=jax.ShapeDtypeStruct((m, d_out), x.dtype),
        grid_spec=pltpu.PrefetchScalarGridSpec(
            num_scalar_prefetch=0,
            grid=grid,
            in_specs=[
                pl.BlockSpec((bm, d_in), lambda i: (i, 0)),    # x tile (f32)
                pl.BlockSpec((d_in, h1), lambda i: (0, 0)),    # w1 (bf16, resident)
                pl.BlockSpec((1, h1), lambda i: (0, 0)),       # b1 (f32)
                pl.BlockSpec((h1, h2), lambda i: (0, 0)),      # w2 (bf16, resident)
                pl.BlockSpec((1, h2), lambda i: (0, 0)),       # b2 (f32)
                pl.BlockSpec((h2, d_out), lambda i: (0, 0)),   # w3 (bf16, resident)
                pl.BlockSpec((1, d_out), lambda i: (0, 0)),    # b3 (f32)
            ],
            out_specs=pl.BlockSpec((bm, d_out), lambda i: (i, 0)),
        ),
        compiler_params=pltpu.CompilerParams(
            dimension_semantics=("parallel",),  # shards grid across both TCs on v7x
        ),
    )(x, w1_c, b1, w2_c, b2, w3_c, b3)

    return out


def init_params(key, input_dim, output_dim, num_hidden1, num_hidden2):
    """Deterministic init. Weights stored as (in, out); biases as (1, out)."""
    ks = jax.random.split(key, 6)

    def linear(kw, kb, fan_in, fan_out):
        # mimic PyTorch's default U(-1/sqrt(fan_in), 1/sqrt(fan_in))
        bound = 1.0 / jnp.sqrt(jnp.float32(fan_in))
        w = jax.random.uniform(kw, (fan_in, fan_out), jnp.float32, -bound, bound)
        b = jax.random.uniform(kb, (1, fan_out), jnp.float32, -bound, bound)
        return w, b

    w1, b1 = linear(ks[0], ks[1], input_dim, num_hidden1)
    w2, b2 = linear(ks[2], ks[3], num_hidden1, num_hidden2)
    w3, b3 = linear(ks[4], ks[5], num_hidden2, output_dim)
    return w1, b1, w2, b2, w3, b3


def reference(x, w1, b1, w2, b2, w3, b3):
    """Pure-JAX reference matching the kernel's numerics (bf16 operands, f32 acc)."""
    bf = jnp.bfloat16

    def lin(a, w, b):
        return jnp.dot(a.astype(bf), w.astype(bf),
                       preferred_element_type=jnp.float32) + b.astype(jnp.float32)

    h = _leaky_relu(lin(x, w1, b1))
    h = _leaky_relu(lin(h, w2, b2))
    return lin(h, w3, b3)


if __name__ == "__main__":
    key = jax.random.PRNGKey(0)
    k_x1, k_x2, k_p = jax.random.split(key, 3)

    input_dim, num_hidden1, num_hidden2, output_dim = 32, 64, 48, 16
    params = init_params(k_p, input_dim, output_dim, num_hidden1, num_hidden2)

    # Hoist the (tiny) weight bf16 casts out of the per-call path.
    w1, b1, w2, b2, w3, b3 = params
    params_bf16 = (w1.astype(jnp.bfloat16), b1,
                   w2.astype(jnp.bfloat16), b2,
                   w3.astype(jnp.bfloat16), b3)

    # Tiny batch: single grid step (bm clamps to 16, ragged rows masked).
    x_small = jax.random.normal(k_x1, (8, input_dim), jnp.float32)
    out_small = jax.block_until_ready(mlp_score_layer(x_small, *params_bf16))
    ref_small = reference(x_small, *params)
    assert out_small.shape == (8, output_dim)
    assert jnp.allclose(out_small, ref_small, atol=1e-3, rtol=1e-3), "small-batch mismatch"

    # Tiled path: force a multi-step grid with a ragged last block (300 % 128 != 0).
    x_big = jax.random.normal(k_x2, (300, input_dim), jnp.float32)
    out_big = jax.block_until_ready(mlp_score_layer(x_big, *params_bf16, block_m=128))
    ref_big = reference(x_big, *params)
    assert out_big.shape == (300, output_dim)
    assert jnp.allclose(out_big, ref_big, atol=1e-3, rtol=1e-3), "tiled-batch mismatch"

    # Default (large) block_m path: single-step grid, bm rounded to 16.
    out_big_default = jax.block_until_ready(mlp_score_layer(x_big, *params_bf16))
    assert jnp.allclose(out_big_default, ref_big, atol=1e-3, rtol=1e-3), "default-block mismatch"

    print("KERNEL_OK")
</pallas_src>

<mosaic_0001>
module attributes {stable_mosaic.version = 11 : i64} {
  func.func @mlp_score_kernel(%arg0: i32, %arg1: memref<16x32xf32, #tpu.memory_space<vmem>>, %arg2: memref<32x64xbf16, #tpu.memory_space<vmem>>, %arg3: memref<1x64xf32, #tpu.memory_space<vmem>>, %arg4: memref<64x48xbf16, #tpu.memory_space<vmem>>, %arg5: memref<1x48xf32, #tpu.memory_space<vmem>>, %arg6: memref<48x16xbf16, #tpu.memory_space<vmem>>, %arg7: memref<1x16xf32, #tpu.memory_space<vmem>>, %arg8: memref<16x16xf32, #tpu.memory_space<vmem>>) attributes {dimension_semantics = [#tpu.dimension_semantics<parallel>], iteration_bounds = array<i64: 1>, scalar_prefetch = 0 : i64, scratch_operands = 0 : i64, tpu.core_type = #tpu.core_type<tc>, window_params = [{transform_indices = @transform_0, window_bounds = array<i64: 16, 32>}, {pipeline_mode = #tpu.pipeline_mode<synchronous>, transform_indices = @transform_1, window_bounds = array<i64: 32, 64>}, {pipeline_mode = #tpu.pipeline_mode<synchronous>, transform_indices = @transform_2, window_bounds = array<i64: 1, 64>}, {pipeline_mode = #tpu.pipeline_mode<synchronous>, transform_indices = @transform_3, window_bounds = array<i64: 64, 48>}, {pipeline_mode = #tpu.pipeline_mode<synchronous>, transform_indices = @transform_4, window_bounds = array<i64: 1, 48>}, {pipeline_mode = #tpu.pipeline_mode<synchronous>, transform_indices = @transform_5, window_bounds = array<i64: 48, 16>}, {pipeline_mode = #tpu.pipeline_mode<synchronous>, transform_indices = @transform_6, window_bounds = array<i64: 1, 16>}, {transform_indices = @transform_7, window_bounds = array<i64: 16, 16>}]} {
    %c0 = arith.constant 0 : index
    %c0_0 = arith.constant 0 : index
    %0 = vector.load %arg1[%c0, %c0_0] : memref<16x32xf32, #tpu.memory_space<vmem>>, vector<16x32xf32>
    %1 = arith.truncf %0 : vector<16x32xf32> to vector<16x32xbf16>
    %c0_1 = arith.constant 0 : index
    %c0_2 = arith.constant 0 : index
    %2 = vector.load %arg2[%c0_1, %c0_2] : memref<32x64xbf16, #tpu.memory_space<vmem>>, vector<32x64xbf16>
    %cst = arith.constant dense<0.000000e+00> : vector<16x64xf32>
    %3 = tpu.matmul %1, %2, %cst {dimension_numbers = #tpu.dot_dimension_numbers<[1], [0], [0], [1], [0, 0, 1, 1], [], []>} : vector<16x32xbf16>, vector<32x64xbf16>, vector<16x64xf32> -> vector<16x64xf32>
    %c0_3 = arith.constant 0 : index
    %c0_4 = arith.constant 0 : index
    %4 = vector.load %arg3[%c0_3, %c0_4] : memref<1x64xf32, #tpu.memory_space<vmem>>, vector<1x64xf32>
    %5 = vector.broadcast %4 : vector<1x64xf32> to vector<16x64xf32>
    %6 = arith.addf %3, %5 : vector<16x64xf32>
    %cst_5 = arith.constant 0.000000e+00 : f32
    %7 = vector.broadcast %cst_5 : f32 to vector<16x64xf32>
    %8 = arith.cmpf ogt, %6, %7 : vector<16x64xf32>
    %cst_6 = arith.constant 1.000000e-01 : f32
    %9 = vector.broadcast %cst_6 : f32 to vector<16x64xf32>
    %10 = arith.mulf %9, %6 : vector<16x64xf32>
    %11 = arith.select %8, %6, %10 : vector<16x64xi1>, vector<16x64xf32>
    %12 = arith.truncf %11 : vector<16x64xf32> to vector<16x64xbf16>
    %c0_7 = arith.constant 0 : index
    %c0_8 = arith.constant 0 : index
    %13 = vector.load %arg4[%c0_7, %c0_8] : memref<64x48xbf16, #tpu.memory_space<vmem>>, vector<64x48xbf16>
    %cst_9 = arith.constant dense<0.000000e+00> : vector<16x48xf32>
    %14 = tpu.matmul %12, %13, %cst_9 {dimension_numbers = #tpu.dot_dimension_numbers<[1], [0], [0], [1], [0, 0, 1, 1], [], []>} : vector<16x64xbf16>, vector<64x48xbf16>, vector<16x48xf32> -> vector<16x48xf32>
    %c0_10 = arith.constant 0 : index
    %c0_11 = arith.constant 0 : index
    %15 = vector.load %arg5[%c0_10, %c0_11] : memref<1x48xf32, #tpu.memory_space<vmem>>, vector<1x48xf32>
    %16 = vector.broadcast %15 : vector<1x48xf32> to vector<16x48xf32>
    %17 = arith.addf %14, %16 : vector<16x48xf32>
    %cst_12 = arith.constant 0.000000e+00 : f32
    %18 = vector.broadcast %cst_12 : f32 to vector<16x48xf32>
    %19 = arith.cmpf ogt, %17, %18 : vector<16x48xf32>
    %cst_13 = arith.constant 1.000000e-01 : f32
    %20 = vector.broadcast %cst_13 : f32 to vector<16x48xf32>
    %21 = arith.mulf %20, %17 : vector<16x48xf32>
    %22 = arith.select %19, %17, %21 : vector<16x48xi1>, vector<16x48xf32>
    %23 = arith.truncf %22 : vector<16x48xf32> to vector<16x48xbf16>
    %c0_14 = arith.constant 0 : index
    %c0_15 = arith.constant 0 : index
    %24 = vector.load %arg6[%c0_14, %c0_15] : memref<48x16xbf16, #tpu.memory_space<vmem>>, vector<48x16xbf16>
    %cst_16 = arith.constant dense<0.000000e+00> : vector<16x16xf32>
    %25 = tpu.matmul %23, %24, %cst_16 {dimension_numbers = #tpu.dot_dimension_numbers<[1], [0], [0], [1], [0, 0, 1, 1], [], []>} : vector<16x48xbf16>, vector<48x16xbf16>, vector<16x16xf32> -> vector<16x16xf32>
    %c0_17 = arith.constant 0 : index
    %c0_18 = arith.constant 0 : index
    %26 = vector.load %arg7[%c0_17, %c0_18] : memref<1x16xf32, #tpu.memory_space<vmem>>, vector<1x16xf32>
    %27 = vector.broadcast %26 : vector<1x16xf32> to vector<16x16xf32>
    %28 = arith.addf %25, %27 : vector<16x16xf32>
    %c0_19 = arith.constant 0 : index
    %c0_20 = arith.constant 0 : index
    %29 = vector.load %arg8[%c0_19, %c0_20] : memref<16x16xf32, #tpu.memory_space<vmem>>, vector<16x16xf32>
    tpu.vector_store %arg8[%c0_19, %c0_20], %28 {strides = array<i32>} : memref<16x16xf32, #tpu.memory_space<vmem>>, vector<16x16xf32>,
    return
  }
  func.func @transform_0(%arg0: i32) -> (i32, i32) {
    %c0_i32 = arith.constant 0 : i32
    %c0_i32_0 = arith.constant 0 : i32
    return %arg0, %c0_i32 : i32, i32
  }
  func.func @transform_1(%arg0: i32) -> (i32, i32) {
    %c0_i32 = arith.constant 0 : i32
    %c0_i32_0 = arith.constant 0 : i32
    %c0_i32_1 = arith.constant 0 : i32
    return %c0_i32, %c0_i32_0 : i32, i32
  }
  func.func @transform_2(%arg0: i32) -> (i32, i32) {
    %c0_i32 = arith.constant 0 : i32
    %c0_i32_0 = arith.constant 0 : i32
    %c0_i32_1 = arith.constant 0 : i32
    return %c0_i32, %c0_i32_0 : i32, i32
  }
  func.func @transform_3(%arg0: i32) -> (i32, i32) {
    %c0_i32 = arith.constant 0 : i32
    %c0_i32_0 = arith.constant 0 : i32
    %c0_i32_1 = arith.constant 0 : i32
    return %c0_i32, %c0_i32_0 : i32, i32
  }
  func.func @transform_4(%arg0: i32) -> (i32, i32) {
    %c0_i32 = arith.constant 0 : i32
    %c0_i32_0 = arith.constant 0 : i32
    %c0_i32_1 = arith.constant 0 : i32
    return %c0_i32, %c0_i32_0 : i32, i32
  }
  func.func @transform_5(%arg0: i32) -> (i32, i32) {
    %c0_i32 = arith.constant 0 : i32
    %c0_i32_0 = arith.constant 0 : i32
    %c0_i32_1 = arith.constant 0 : i32
    return %c0_i32, %c0_i32_0 : i32, i32
  }
  func.func @transform_6(%arg0: i32) -> (i32, i32) {
    %c0_i32 = arith.constant 0 : i32
    %c0_i32_0 = arith.constant 0 : i32
    %c0_i32_1 = arith.constant 0 : i32
    return %c0_i32, %c0_i32_0 : i32, i32
  }
  func.func @transform_7(%arg0: i32) -> (i32, i32) {
    %c0_i32 = arith.constant 0 : i32
    %c0_i32_0 = arith.constant 0 : i32
    return %arg0, %c0_i32 : i32, i32
  }
}

</mosaic_0001>

<llo_original>
// kernel: mlp_score_layer.1
$region0: #{mlp_score_layer.1}
  #allocation0 [shape = 'u32[]', space=smem, size = 0x4, offset = 0x4, fixed_abs, tag = 'smem constant byte address 0x4 - core index']
  #allocation1 [shape = 'u32[144,128]{1,0:T(1,128)}', space=vmem, size = 0x12000, scoped, tag = 'internal scratch']
  %s0 = inlined_call_operand.vmem [shape: f32[8,32], index: 0, kind: input, shape index: {}]
  %s1 = inlined_call_operand.vmem [shape: bf16[32,64], index: 1, kind: input, shape index: {}]
  %s2 = inlined_call_operand.vmem [shape: f32[1,64], index: 2, kind: input, shape index: {}]
  %s3 = inlined_call_operand.vmem [shape: bf16[64,48], index: 3, kind: input, shape index: {}]
  %s4 = inlined_call_operand.vmem [shape: f32[1,48], index: 4, kind: input, shape index: {}]
  %s5 = inlined_call_operand.vmem [shape: bf16[48,16], index: 5, kind: input, shape index: {}]
  %s6 = inlined_call_operand.vmem [shape: f32[1,16], index: 6, kind: input, shape index: {}]
  %s7 = inlined_call_operand.hbm [shape: f32[8,16], index: 7, kind: output, shape index: {}]
  %s8 = sld [smem:[#allocation0]]
  $region38: #{mlp_score_layer.1} parent=0
    _
  %s10 = ssub.s32 1, %s8
  %s11 = scalar_select 0, %s10, %s8
  $region1: #{mlp_score_layer.1} parent=0
    #allocation2 [shape = 'u8[8192]{0}', space=vmem, size = 0x2000, scoped, tag = 'output window, operand 0, single buffered']
    #allocation3 [shape = 's32[1]{0}', space=sflag, size = 0x4, scoped, tag = 'scoped memory for mlp_score_layer.1']
    %12 = vsyncpa [#allocation3], 0
    // Predicated region
    $region2: #{mlp_score_layer.1} parent=1 // pred_check
      _
    $region3: #{mlp_score_layer.1} parent=1 // pred_check_branch
      %14 = sbr.rel (0) target = $region5
    $region4: #{mlp_score_layer.1} parent=1 // pred_region
      _
    $region5: #{mlp_score_layer.1} parent=1 // pred_fallthru
      _
    // Predicated region
    $region6: #{mlp_score_layer.1} parent=1 // pred_check
      _
    $region7: #{mlp_score_layer.1} parent=1 // pred_check_branch
      %16 = sbr.rel (0) target = $region9
    $region8: #{mlp_score_layer.1} parent=1 // pred_region
      _
    $region9: #{mlp_score_layer.1} parent=1 // pred_fallthru
      _
    // Predicated region
    $region10: #{mlp_score_layer.1} parent=1 // pred_check
      _
    $region11: #{mlp_score_layer.1} parent=1 // pred_check_branch
      %18 = sbr.rel (0) target = $region13
    $region12: #{mlp_score_layer.1} parent=1 // pred_region
      _
    $region13: #{mlp_score_layer.1} parent=1 // pred_fallthru
      _
    // Predicated region
    $region14: #{mlp_score_layer.1} parent=1 // pred_check
      _
    $region15: #{mlp_score_layer.1} parent=1 // pred_check_branch
      %20 = sbr.rel (0) target = $region17
    $region16: #{mlp_score_layer.1} parent=1 // pred_region
      _
    $region17: #{mlp_score_layer.1} parent=1 // pred_fallthru
      _
    // Predicated region
    $region18: #{mlp_score_layer.1} parent=1 // pred_check
      _
    $region19: #{mlp_score_layer.1} parent=1 // pred_check_branch
      %22 = sbr.rel (0) target = $region21
    $region20: #{mlp_score_layer.1} parent=1 // pred_region
      _
    $region21: #{mlp_score_layer.1} parent=1 // pred_fallthru
      _
    // Predicated region
    $region22: #{mlp_score_layer.1} parent=1 // pred_check
      _
    $region23: #{mlp_score_layer.1} parent=1 // pred_check_branch
      %24 = sbr.rel (0) target = $region25
    $region24: #{mlp_score_layer.1} parent=1 // pred_region
      _
    $region25: #{mlp_score_layer.1} parent=1 // pred_fallthru
      _
    // Predicated region
    $region26: #{mlp_score_layer.1} parent=1 // pred_check
      _
    $region27: #{mlp_score_layer.1} parent=1 // pred_check_branch
      %26 = sbr.rel (0) target = $region29
    $region28: #{mlp_score_layer.1} parent=1 // pred_region
      _
    $region29: #{mlp_score_layer.1} parent=1 // pred_fallthru
      _
    %v28 = vld [vmem:[%s0] sm:$0xff]
    %v29 = vld [vmem:[%s0 + $0x8] sm:$0xff]
    %v30 = vpack.c.bf16 %v29, %v28
    %v31 = vld [vmem:[%s1] sm:$0xf]
    %v32 = vld [vmem:[%s1 + $0x4] sm:$0xf]
    %v33 = vld [vmem:[%s1 + $0x8] sm:$0xf]
    %v34 = vld [vmem:[%s1 + $0xc] sm:$0xf]
    %v35 = vld [vmem:[%s2] sm:$0x1]
    %v37 = vlaneseq
    %v38 = vshrl.u32 %v37, 7
    %v39 = vsub.s32 0, %v38
    %v40 = vrot.slane %v35, %v39
    %v46 = vunpack.c.l.b16 %v31
    %v47 = vunpack.c.l.b16 %v32
    %v48 = vunpack.c.l.b16 %v33
    %v49 = vunpack.c.l.b16 %v34
    %v50 = vpack.c.b16 %v47, %v46
    %v51 = vpack.c.b16 %v49, %v48
    %vm54 = vcmask 261120
    %v56 = vsel %vm54, %v30, 0
    %58 = vmatprep.subr.bf16.mxu0 0
    %59 = vmatpush1.bf16.msra.mxu0 %v50
    %60 = vmatprep.subr.bf16.mxu0 0
    %61 = vmatpush1.bf16.msra.mxu0 %v51
    %62 = vmatprep.subr.bf16.mxu0 0
    %63 = vmatpush1.bf16.msra.mxu0 0
    %64 = vmatprep.subr.bf16.mxu0 0
    %65 = vmatpush1.bf16.msra.mxu0 0
    %66 = vmatprep.subr.bf16.mxu0 0
    %67 = vmatpush1.bf16.msra.mxu0 0
    %68 = vmatprep.subr.bf16.mxu0 0
    %69 = vmatpush1.bf16.msra.mxu0 0
    %70 = vmatprep.subr.bf16.mxu0 0
    %71 = vmatpush1.bf16.msra.mxu0 0
    %72 = vmatprep.subr.bf16.mxu0 0
    %73 = vmatpush1.bf16.msra.mxu0 0
    %74 = vmatprep.subr.bf16.mxu0 0
    %75 = vmatpush1.bf16.msra.mxu0 0
    %76 = vmatprep.subr.bf16.mxu0 0
    %77 = vmatpush1.bf16.msra.mxu0 0
    %78 = vmatprep.subr.bf16.mxu0 0
    %79 = vmatpush1.bf16.msra.mxu0 0
    %80 = vmatprep.subr.bf16.mxu0 0
    %81 = vmatpush1.bf16.msra.mxu0 0
    %82 = vmatprep.subr.bf16.mxu0 0
    %83 = vmatpush1.bf16.msra.mxu0 0
    %84 = vmatprep.subr.bf16.mxu0 0
    %85 = vmatpush1.bf16.msra.mxu0 0
    %86 = vmatprep.subr.bf16.mxu0 0
    %87 = vmatpush1.bf16.msra.mxu0 0
    %88 = vmatprep.subr.bf16.mxu0 0
    %89 = vmatpush1.bf16.msra.mxu0 0
    %90 = vmatprep.mubr.bf16.mxu0 0
    %91 = vmatmul.mubr.bf16.gmra.mrb[0].mxu0 %v56
    %v92 = vpop.f32.mrb[0].mxu0
    %v93 = vadd.f32 %v40, %v92
    %v94 = vpop.f32.mrb[0].mxu0
    %v95 = vpop.f32.mrb[0].mxu0
    %v96 = vadd.f32 %v40, %v95
    %v97 = vpop.f32.mrb[0].mxu0
    %98 = vdwg.mxu0
    %vm99 = vcmp.gt.f32.partialorder %v93, 0.0
    %vm100 = vcmp.gt.f32.partialorder %v96, 0.0
    %v101 = vmul.f32 %v93, 0.1
    %v102 = vmul.f32 %v96, 0.1
    %v103 = vsel %vm99, %v93, %v101
    %v104 = vsel %vm100, %v96, %v102
    %v105 = vpack.c.bf16 %v104, %v103
    %v106 = vld [vmem:[%s3] sm:$0xf]
    %v107 = vld [vmem:[%s3 + $0x4] sm:$0xf]
    %v108 = vld [vmem:[%s3 + $0x8] sm:$0xf]
    %v109 = vld [vmem:[%s3 + $0xc] sm:$0xf]
    %v110 = vld [vmem:[%s3 + $0x10] sm:$0xf]
    %v111 = vld [vmem:[%s3 + $0x14] sm:$0xf]
    %v112 = vld [vmem:[%s3 + $0x18] sm:$0xf]
    %v113 = vld [vmem:[%s3 + $0x1c] sm:$0xf]
    %v114 = vld [vmem:[%s4] sm:$0x1]
    %v116 = vlaneseq
    %v117 = vshrl.u32 %v116, 7
    %v118 = vsub.s32 0, %v117
    %v119 = vrot.slane %v114, %v118
    %v129 = vunpack.c.l.b16 %v106
    %v130 = vunpack.c.l.b16 %v107
    %v131 = vunpack.c.l.b16 %v108
    %v132 = vunpack.c.l.b16 %v109
    %v133 = vunpack.c.l.b16 %v110
    %v134 = vunpack.c.l.b16 %v111
    %v135 = vunpack.c.l.b16 %v112
    %v136 = vunpack.c.l.b16 %v113
    %v137 = vpack.c.b16 %v130, %v129
    %v138 = vpack.c.b16 %v132, %v131
    %v139 = vpack.c.b16 %v134, %v133
    %v140 = vpack.c.b16 %v136, %v135
    %vm145 = vcmask 523264
    %v147 = vsel %vm145, %v105, 0
    %149 = vmatprep.subr.bf16.mxu0 0
    %150 = vmatpush1.bf16.msra.mxu0 %v137
    %151 = vmatprep.subr.bf16.mxu0 0
    %152 = vmatpush1.bf16.msra.mxu0 %v138
    %153 = vmatprep.subr.bf16.mxu0 0
    %154 = vmatpush1.bf16.msra.mxu0 %v139
    %155 = vmatprep.subr.bf16.mxu0 0
    %156 = vmatpush1.bf16.msra.mxu0 %v140
    %157 = vmatprep.subr.bf16.mxu0 0
    %158 = vmatpush1.bf16.msra.mxu0 0
    %159 = vmatprep.subr.bf16.mxu0 0
    %160 = vmatpush1.bf16.msra.mxu0 0
    %161 = vmatprep.subr.bf16.mxu0 0
    %162 = vmatpush1.bf16.msra.mxu0 0
    %163 = vmatprep.subr.bf16.mxu0 0
    %164 = vmatpush1.bf16.msra.mxu0 0
    %165 = vmatprep.subr.bf16.mxu0 0
    %166 = vmatpush1.bf16.msra.mxu0 0
    %167 = vmatprep.subr.bf16.mxu0 0
    %168 = vmatpush1.bf16.msra.mxu0 0
    %169 = vmatprep.subr.bf16.mxu0 0
    %170 = vmatpush1.bf16.msra.mxu0 0
    %171 = vmatprep.subr.bf16.mxu0 0
    %172 = vmatpush1.bf16.msra.mxu0 0
    %173 = vmatprep.subr.bf16.mxu0 0
    %174 = vmatpush1.bf16.msra.mxu0 0
    %175 = vmatprep.subr.bf16.mxu0 0
    %176 = vmatpush1.bf16.msra.mxu0 0
    %177 = vmatprep.subr.bf16.mxu0 0
    %178 = vmatpush1.bf16.msra.mxu0 0
    %179 = vmatprep.subr.bf16.mxu0 0
    %180 = vmatpush1.bf16.msra.mxu0 0
    %181 = vmatprep.mubr.bf16.mxu0 0
    %182 = vmatmul.mubr.bf16.gmra.mrb[0].mxu0 %v147
    %v183 = vpop.f32.mrb[0].mxu0
    %v184 = vadd.f32 %v119, %v183
    %v185 = vpop.f32.mrb[0].mxu0
    %v186 = vpop.f32.mrb[0].mxu0
    %v187 = vadd.f32 %v119, %v186
    %v188 = vpop.f32.mrb[0].mxu0
    %189 = vdwg.mxu0
    %vm190 = vcmp.gt.f32.partialorder %v184, 0.0
    %vm191 = vcmp.gt.f32.partialorder %v187, 0.0
    %v192 = vmul.f32 %v184, 0.1
    %v193 = vmul.f32 %v187, 0.1
    %v194 = vsel %vm190, %v184, %v192
    %v195 = vsel %vm191, %v187, %v193
    %v196 = vpack.c.bf16 %v195, %v194
    %v197 = vld [vmem:[%s5] sm:$0xf]
    %v198 = vld [vmem:[%s5 + $0x4] sm:$0xf]
    %v199 = vld [vmem:[%s5 + $0x8] sm:$0xf]
    %v200 = vld [vmem:[%s5 + $0xc] sm:$0xf]
    %v201 = vld [vmem:[%s5 + $0x10] sm:$0xf]
    %v202 = vld [vmem:[%s5 + $0x14] sm:$0xf]
    %v203 = vld [vmem:[%s6] sm:$0x1]
    %v205 = vlaneseq
    %v206 = vshrl.u32 %v205, 7
    %v207 = vsub.s32 0, %v206
    %v208 = vrot.slane %v203, %v207
    %v216 = vunpack.c.l.b16 %v197
    %v217 = vunpack.c.l.b16 %v198
    %v218 = vunpack.c.l.b16 %v199
    %v219 = vunpack.c.l.b16 %v200
    %v220 = vunpack.c.l.b16 %v201
    %v221 = vunpack.c.l.b16 %v202
    %v222 = vpack.c.b16 %v217, %v216
    %v223 = vpack.c.b16 %v219, %v218
    %v224 = vpack.c.b16 %v221, %v220
    %vm228 = vcmask 392192
    %v230 = vsel %vm228, %v196, 0
    %232 = vmatprep.subr.bf16.mxu0 0
    %233 = vmatpush1.bf16.msra.mxu0 %v222
    %234 = vmatprep.subr.bf16.mxu0 0
    %235 = vmatpush1.bf16.msra.mxu0 %v223
    %236 = vmatprep.subr.bf16.mxu0 0
    %237 = vmatpush1.bf16.msra.mxu0 %v224
    %238 = vmatprep.subr.bf16.mxu0 0
    %239 = vmatpush1.bf16.msra.mxu0 0
    %240 = vmatprep.subr.bf16.mxu0 0
    %241 = vmatpush1.bf16.msra.mxu0 0
    %242 = vmatprep.subr.bf16.mxu0 0
    %243 = vmatpush1.bf16.msra.mxu0 0
    %244 = vmatprep.subr.bf16.mxu0 0
    %245 = vmatpush1.bf16.msra.mxu0 0
    %246 = vmatprep.subr.bf16.mxu0 0
    %247 = vmatpush1.bf16.msra.mxu0 0
    %248 = vmatprep.subr.bf16.mxu0 0
    %249 = vmatpush1.bf16.msra.mxu0 0
    %250 = vmatprep.subr.bf16.mxu0 0
    %251 = vmatpush1.bf16.msra.mxu0 0
    %252 = vmatprep.subr.bf16.mxu0 0
    %253 = vmatpush1.bf16.msra.mxu0 0
    %254 = vmatprep.subr.bf16.mxu0 0
    %255 = vmatpush1.bf16.msra.mxu0 0
    %256 = vmatprep.subr.bf16.mxu0 0
    %257 = vmatpush1.bf16.msra.mxu0 0
    %258 = vmatprep.subr.bf16.mxu0 0
    %259 = vmatpush1.bf16.msra.mxu0 0
    %260 = vmatprep.subr.bf16.mxu0 0
    %261 = vmatpush1.bf16.msra.mxu0 0
    %262 = vmatprep.subr.bf16.mxu0 0
    %263 = vmatpush1.bf16.msra.mxu0 0
    %264 = vmatprep.mubr.bf16.mxu0 0
    %265 = vmatmul.mubr.bf16.gmra.mrb[0].mxu0 %v230
    %v266 = vpop.f32.mrb[0].mxu0
    %v267 = vadd.f32 %v208, %v266
    %v268 = vpop.f32.mrb[0].mxu0
    %v269 = vpop.f32.mrb[0].mxu0
    %v270 = vadd.f32 %v208, %v269
    %v271 = vpop.f32.mrb[0].mxu0
    %272 = vdwg.mxu0
    %vm273 = vcmask 130048
    %274 = vst.msk [vmem:[#allocation2] sm:$0xff] %vm273, %v267
    %275 = vst.msk [vmem:[#allocation2 + $0x8] sm:$0xff] %vm273, %v270
    // Predicated region
    $region30: #{mlp_score_layer.1} parent=1 // pred_check
      _
    $region31: #{mlp_score_layer.1} parent=1 // pred_check_branch
      %277 = sbr.rel (0) target = $region33
    $region32: #{mlp_score_layer.1} parent=1 // pred_region
      %s279 = ssub.s32 256, 128
      %280 = vsyncadd [#allocation3], %s279
      %s281 = sshll.u32 [#allocation2], 4
      %s282 = int_to_ptr.vmem [resolvable:$true] %s281
      %287 = dma.vmem_to_hbm [thread:$0]  %s282, 128, %s7, [#allocation3], 128, 128, 8
    $region33: #{mlp_score_layer.1} parent=1 // pred_fallthru
      _
    // Predicated region
    $region34: #{mlp_score_layer.1} parent=1 // pred_check
      _
    $region35: #{mlp_score_layer.1} parent=1 // pred_check_branch
      %289 = sbr.rel (0) target = $region37
    $region36: #{mlp_score_layer.1} parent=1 // pred_region
      %290 = dma.done [#allocation3], 256
    $region37: #{mlp_score_layer.1} parent=1 // pred_fallthru
      _
    %291 = vsyncpa [#allocation3], 1

</llo_original>
